<compile_context>
chip_gen: v5e
topology: v5e:2x2
jax: 0.10.0
libtpu: 0.0.40
codegen_flags: <defaults>
</compile_context>

<pallas_src>
import jax
import jax.numpy as jnp
from jax.experimental import pallas as pl
from jax.experimental.pallas import tpu as pltpu


def _embedding_baseline_kernel(inv_scale_sq_ref, x_ref, b_ref, o_ref):
    # inv_scale_sq_ref: SMEM (1,) f32
    # x_ref: VMEM (TB, D) input dtype ; b_ref: VMEM (1, D) f32
    # o_ref: VMEM (1, TB) f32  (lane-dense output slab)
    inv_s2 = inv_scale_sq_ref[0]
    x = x_ref[...].astype(jnp.float32)              # cast after load (bf16 ok)
    b = b_ref[...].astype(jnp.float32)
    diff = x - b                                    # (TB, D) VPU broadcast sub
    row_sq = jnp.sum(diff * diff, axis=1)           # (TB,)   XLU lane-reduce
    vals = -jnp.log1p(row_sq * inv_s2)              # EUP log, VPU mul
    o_ref[0, :] = vals                              # lane-dense store


def _round_up(x, m):
    return ((x + m - 1) // m) * m


def _choose_batch_tile(B, D, itemsize, *, per_buffer_bytes=4 << 20,
                       min_steps=8, min_buffer_bytes=1 << 20):
    """Pick a batch tile (multiple of 128 rows).

    Targets ~4 MiB per input buffer (Pallas double-buffers it -> ~8 MiB),
    which is safe on all generations (v7x has 64 MiB VMEM per TensorCore).
    Shrinks only to give >= min_steps grid steps (pipeline overlap + even
    split across v7x's two TCs), never below a ~1 MiB tile floor where
    per-step overhead (~0.35 us) starts to dominate.
    """
    row_bytes = max(D * itemsize, 1)
    # Largest tile within the per-buffer budget.
    tb = max(128, (per_buffer_bytes // row_bytes) // 128 * 128)
    # Never larger than the (128-rounded) batch itself.
    tb = min(tb, _round_up(max(B, 1), 128))
    # Prefer >= min_steps grid steps, but keep tiles >= ~min_buffer_bytes.
    tb_for_steps = _round_up(max(1, (B + min_steps - 1) // min_steps), 128)
    tb_floor = max(128, min(tb, (min_buffer_bytes // row_bytes) // 128 * 128))
    if tb_for_steps < tb:
        tb = max(tb_for_steps, tb_floor)
    return tb


def embedding_baseline(context_embedding, baseline_embedding, kernel_scale,
                       *, tb=None):
    """Pallas equivalent of EmbeddingBaseline.forward with a Cauchy log-kernel.

    context_embedding:  [B, D] float32 (or bfloat16, cast at the producer,
                        to halve HBM traffic)
    baseline_embedding: [1, D] float32 (broadcast over batch; kept f32)
    kernel_scale:       python float / scalar
    returns:            [B, 1] float32  (== kernel(...).unsqueeze(1))
    """
    B, D = context_embedding.shape
    assert baseline_embedding.shape == (1, D)

    in_dtype = context_embedding.dtype
    itemsize = jnp.dtype(in_dtype).itemsize
    if tb is None:
        tb = _choose_batch_tile(B, D, itemsize)
    assert tb % 128 == 0, "batch tile must be a multiple of 128 (lane-dense out)"
    # TODO(synk): for very large D (2*128*D*itemsize >> VMEM budget), add a
    # second 'arbitrary' grid axis over D with a VMEM accumulator; not needed
    # for typical embedding dims.
    # NOTE: for D < 128 only D of 128 lanes per vreg are populated; HBM
    # throughput (the bottleneck) is unaffected, so this is left as-is.

    scale = jnp.asarray(kernel_scale, dtype=jnp.float32)
    inv_scale_sq = jnp.reshape(1.0 / (scale * scale), (1,)).astype(jnp.float32)

    grid = (pl.cdiv(B, tb),)
    cost = pl.CostEstimate(
        flops=3 * B * D,                           # sub, mul, add-reduce
        transcendentals=B,                         # one log per row
        bytes_accessed=B * D * itemsize + D * 4 + B * 4,
    )

    out = pl.pallas_call(
        _embedding_baseline_kernel,
        out_shape=jax.ShapeDtypeStruct((1, B), jnp.float32),
        grid=grid,
        in_specs=[
            pl.BlockSpec(memory_space=pltpu.MemorySpace.SMEM),   # inv_scale_sq
            pl.BlockSpec((tb, D), lambda i: (i, 0)),             # context tile
            pl.BlockSpec((1, D), lambda i: (0, 0)),              # baseline (resident)
        ],
        out_specs=pl.BlockSpec((1, tb), lambda i: (0, i)),       # lane-dense slab
        compiler_params=pltpu.CompilerParams(
            dimension_semantics=("parallel",),
            vmem_limit_bytes=32 * 1024 * 1024,
        ),
        cost_estimate=cost,
    )(inv_scale_sq, context_embedding, baseline_embedding.astype(jnp.float32))

    # Layout plumbing only: (1, B) slab -> [B, 1] (the .unsqueeze(1)).
    return out.reshape(B, 1)


def embedding_baseline_ref(context_embedding, baseline_embedding, kernel_scale):
    # Pure-JAX reference mirroring the PyTorch semantics exactly.
    diff = (context_embedding.astype(jnp.float32)
            - baseline_embedding.astype(jnp.float32))
    sq = jnp.sum(diff * diff, axis=-1)                   # [B]
    log_baseline = -jnp.log1p(sq / (kernel_scale ** 2))  # kernel(...)
    return log_baseline[:, None]                         # .unsqueeze(1)


if __name__ == "__main__":
    key = jax.random.PRNGKey(0)
    k1, k2, k3 = jax.random.split(key, 3)

    # Small shapes consistent with the module (exercises the partial-block
    # path since B < 128).
    B, D = 8, 32
    context_embedding = jax.random.normal(k1, (B, D), dtype=jnp.float32)
    baseline_embedding = jax.random.normal(k2, (1, D), dtype=jnp.float32)
    kernel_scale = 1.0

    out = embedding_baseline(context_embedding, baseline_embedding, kernel_scale)
    out = jax.block_until_ready(out)
    ref = embedding_baseline_ref(context_embedding, baseline_embedding,
                                 kernel_scale)
    assert out.shape == (B, 1)
    assert jnp.allclose(out, ref, atol=1e-5, rtol=1e-5)

    # Second check: ragged batch with a multi-step grid (forces tb=128 so the
    # last block is partial and the grid has several steps).
    B2, D2 = 300, 64
    ctx2 = jax.random.normal(k3, (B2, D2), dtype=jnp.float32)
    base2 = jax.random.normal(k2, (1, D2), dtype=jnp.float32)
    out2 = jax.block_until_ready(
        embedding_baseline(ctx2, base2, 2.0, tb=128))
    ref2 = embedding_baseline_ref(ctx2, base2, 2.0)
    assert out2.shape == (B2, 1)
    assert jnp.allclose(out2, ref2, atol=1e-5, rtol=1e-5)

    print("KERNEL_OK")
</pallas_src>

<mosaic_0001>
module attributes {stable_mosaic.version = 11 : i64} {
  func.func @_embedding_baseline_kernel(%arg0: i32, %arg1: memref<1xf32, #tpu.memory_space<smem>>, %arg2: memref<128x32xf32, #tpu.memory_space<vmem>>, %arg3: memref<1x32xf32, #tpu.memory_space<vmem>>, %arg4: memref<1x128xf32, #tpu.memory_space<vmem>>) attributes {dimension_semantics = [#tpu.dimension_semantics<parallel>], iteration_bounds = array<i64: 1>, scalar_prefetch = 0 : i64, scratch_operands = 0 : i64, tpu.core_type = #tpu.core_type<tc>, window_params = [{transform_indices = @transform_0, window_bounds = array<i64: 1>}, {transform_indices = @transform_1, window_bounds = array<i64: 128, 32>}, {pipeline_mode = #tpu.pipeline_mode<synchronous>, transform_indices = @transform_2, window_bounds = array<i64: 1, 32>}, {transform_indices = @transform_3, window_bounds = array<i64: 1, 128>}]} {
    %c0 = arith.constant 0 : index
    %0 = memref.load %arg1[%c0] : memref<1xf32, #tpu.memory_space<smem>>
    %c0_0 = arith.constant 0 : index
    %c0_1 = arith.constant 0 : index
    %1 = vector.load %arg2[%c0_0, %c0_1] : memref<128x32xf32, #tpu.memory_space<vmem>>, vector<128x32xf32>
    %c0_2 = arith.constant 0 : index
    %c0_3 = arith.constant 0 : index
    %2 = vector.load %arg3[%c0_2, %c0_3] : memref<1x32xf32, #tpu.memory_space<vmem>>, vector<1x32xf32>
    %3 = vector.broadcast %2 : vector<1x32xf32> to vector<128x32xf32>
    %4 = arith.subf %1, %3 : vector<128x32xf32>
    %5 = arith.mulf %4, %4 : vector<128x32xf32>
    %cst = arith.constant dense<0.000000e+00> : vector<128xf32>
    %6 = vector.multi_reduction <add>, %5, %cst [1] : vector<128x32xf32> to vector<128xf32>
    %7 = vector.broadcast %0 : f32 to vector<128xf32>
    %8 = arith.mulf %6, %7 : vector<128xf32>
    %9 = math.log1p %8 : vector<128xf32>
    %cst_4 = arith.constant 0.000000e+00 : f32
    %10 = vector.broadcast %cst_4 : f32 to vector<128xf32>
    %11 = arith.subf %10, %9 : vector<128xf32>
    %c0_5 = arith.constant 0 : index
    %c0_6 = arith.constant 0 : index
    %12 = vector.load %arg4[%c0_5, %c0_6] : memref<1x128xf32, #tpu.memory_space<vmem>>, vector<1x128xf32>
    %13 = vector.shape_cast %12 : vector<1x128xf32> to vector<128xf32>
    %14 = vector.shape_cast %11 : vector<128xf32> to vector<1x128xf32>
    tpu.vector_store %arg4[%c0_5, %c0_6], %14 {strides = array<i32>} : memref<1x128xf32, #tpu.memory_space<vmem>>, vector<1x128xf32>,
    return
  }
  func.func @transform_0(%arg0: i32) -> i32 {
    %c0_i32 = arith.constant 0 : i32
    %c0_i32_0 = arith.constant 0 : i32
    return %c0_i32 : i32
  }
  func.func @transform_1(%arg0: i32) -> (i32, i32) {
    %c0_i32 = arith.constant 0 : i32
    %c0_i32_0 = arith.constant 0 : i32
    return %arg0, %c0_i32 : i32, i32
  }
  func.func @transform_2(%arg0: i32) -> (i32, i32) {
    %c0_i32 = arith.constant 0 : i32
    %c0_i32_0 = arith.constant 0 : i32
    %c0_i32_1 = arith.constant 0 : i32
    return %c0_i32, %c0_i32_0 : i32, i32
  }
  func.func @transform_3(%arg0: i32) -> (i32, i32) {
    %c0_i32 = arith.constant 0 : i32
    %c0_i32_0 = arith.constant 0 : i32
    return %c0_i32, %arg0 : i32, i32
  }
}

</mosaic_0001>

<llo_original>
// kernel: tpu_custom_call.1
$region0: #{tpu_custom_call.1}
  #allocation0 [shape = 'u32[]', space=smem, size = 0x4, offset = 0x4, fixed_abs, tag = 'smem constant byte address 0x4 - core index']
  #allocation1 [shape = 'u32[72,128]{1,0:T(1,128)}', space=vmem, size = 0x9000, scoped, tag = 'internal scratch']
  #allocation2 [shape = 'f32[1]{0:T(128)S(6)}', space=smem, size = 0x200, scoped, tag = 'scoped memory for tpu_custom_call.1']
  %s0 = inlined_call_operand.<no memory space> [shape: f32[1], index: 0, kind: input, shape index: {}]
  %s1 = inlined_call_operand.hbm [shape: f32[8,32], index: 1, kind: input, shape index: {}]
  %s2 = inlined_call_operand.vmem [shape: f32[1,32], index: 2, kind: input, shape index: {}]
  %s3 = inlined_call_operand.hbm [shape: f32[1,8], index: 3, kind: output, shape index: {}]
  %s4 = sld [smem:[#allocation0]]
  $region26: #{tpu_custom_call.1} parent=0
    _
  %s6 = ssub.s32 1, %s4
  %s7 = scalar_select 0, %s6, %s4
  %8 = sst [smem:[#allocation2]] %s0
  $region1: #{tpu_custom_call.1} parent=0
    #allocation3 [shape = 'u8[65536]{0}', space=vmem, size = 0x10000, scoped, tag = 'input window, operand 1, single buffered']
    #allocation4 [shape = 's32[1]{0}', space=sflag, size = 0x4, scoped, tag = 'scoped memory for tpu_custom_call.1']
    #allocation5 [shape = 's32[1]{0}', space=sflag, size = 0x4, scoped, tag = 'scoped memory for tpu_custom_call.1']
    #allocation6 [shape = 'u8[512]{0}', space=vmem, size = 0x400, scoped, tag = 'output window, operand 0, single buffered']
    %9 = vsyncpa [#allocation4], 0
    %10 = vsyncpa [#allocation5], 0
    // Predicated region
    $region2: #{tpu_custom_call.1} parent=1 // pred_check
      _
    $region3: #{tpu_custom_call.1} parent=1 // pred_check_branch
      %12 = sbr.rel (0) target = $region5
    $region4: #{tpu_custom_call.1} parent=1 // pred_region
      _
    $region5: #{tpu_custom_call.1} parent=1 // pred_fallthru
      _
    // Predicated region
    $region6: #{tpu_custom_call.1} parent=1 // pred_check
      _
    $region7: #{tpu_custom_call.1} parent=1 // pred_check_branch
      %14 = sbr.rel (0) target = $region9
    $region8: #{tpu_custom_call.1} parent=1 // pred_region
      %16 = vsyncadd [#allocation4], 1920
      %s17 = sshll.u32 %s1, 4
      %s18 = int_to_ptr.hbm [resolvable:$true] %s17
      %s19 = sshll.u32 [#allocation3], 4
      %s20 = int_to_ptr.vmem [resolvable:$true] %s19
      %25 = dma.hbm_to_vmem [thread:$0]  %s18, 128, %s20, [#allocation4], 128, 128, 8
    $region9: #{tpu_custom_call.1} parent=1 // pred_fallthru
      _
    // Predicated region
    $region10: #{tpu_custom_call.1} parent=1 // pred_check
      _
    $region11: #{tpu_custom_call.1} parent=1 // pred_check_branch
      %27 = sbr.rel (0) target = $region13
    $region12: #{tpu_custom_call.1} parent=1 // pred_region
      _
    $region13: #{tpu_custom_call.1} parent=1 // pred_fallthru
      _
    // Predicated region
    $region14: #{tpu_custom_call.1} parent=1 // pred_check
      _
    $region15: #{tpu_custom_call.1} parent=1 // pred_check_branch
      %29 = sbr.rel (0) target = $region17
    $region16: #{tpu_custom_call.1} parent=1 // pred_region
      %31 = dma.done [#allocation4], 2048
    $region17: #{tpu_custom_call.1} parent=1 // pred_fallthru
      _
    %s32 = sld [smem:[#allocation2]]
    %v33 = vld [vmem:[#allocation3] sm:$0xff]
    %v34 = vld [vmem:[#allocation3 + $0x8] sm:$0xff]
    %v35 = vld [vmem:[#allocation3 + $0x10] sm:$0xff]
    %v36 = vld [vmem:[#allocation3 + $0x18] sm:$0xff]
    %v37 = vld [vmem:[#allocation3 + $0x20] sm:$0xff]
    %v38 = vld [vmem:[#allocation3 + $0x28] sm:$0xff]
    %v39 = vld [vmem:[#allocation3 + $0x30] sm:$0xff]
    %v40 = vld [vmem:[#allocation3 + $0x38] sm:$0xff]
    %v41 = vld [vmem:[#allocation3 + $0x40] sm:$0xff]
    %v42 = vld [vmem:[#allocation3 + $0x48] sm:$0xff]
    %v43 = vld [vmem:[#allocation3 + $0x50] sm:$0xff]
    %v44 = vld [vmem:[#allocation3 + $0x58] sm:$0xff]
    %v45 = vld [vmem:[#allocation3 + $0x60] sm:$0xff]
    %v46 = vld [vmem:[#allocation3 + $0x68] sm:$0xff]
    %v47 = vld [vmem:[#allocation3 + $0x70] sm:$0xff]
    %v48 = vld [vmem:[#allocation3 + $0x78] sm:$0xff]
    %v49 = vld [vmem:[%s2] sm:$0x1]
    %v51 = vperm.slane %v49, 0
    %v53 = vsub.f32 %v33, %v51
    %v54 = vsub.f32 %v34, %v51
    %v55 = vsub.f32 %v35, %v51
    %v56 = vsub.f32 %v36, %v51
    %v57 = vsub.f32 %v37, %v51
    %v58 = vsub.f32 %v38, %v51
    %v59 = vsub.f32 %v39, %v51
    %v60 = vsub.f32 %v40, %v51
    %v61 = vsub.f32 %v41, %v51
    %v62 = vsub.f32 %v42, %v51
    %v63 = vsub.f32 %v43, %v51
    %v64 = vsub.f32 %v44, %v51
    %v65 = vsub.f32 %v45, %v51
    %v66 = vsub.f32 %v46, %v51
    %v67 = vsub.f32 %v47, %v51
    %v68 = vsub.f32 %v48, %v51
    %v69 = vmul.f32 %v53, %v53
    %v70 = vmul.f32 %v54, %v54
    %v71 = vmul.f32 %v55, %v55
    %v72 = vmul.f32 %v56, %v56
    %v73 = vmul.f32 %v57, %v57
    %v74 = vmul.f32 %v58, %v58
    %v75 = vmul.f32 %v59, %v59
    %v76 = vmul.f32 %v60, %v60
    %v77 = vmul.f32 %v61, %v61
    %v78 = vmul.f32 %v62, %v62
    %v79 = vmul.f32 %v63, %v63
    %v80 = vmul.f32 %v64, %v64
    %v81 = vmul.f32 %v65, %v65
    %v82 = vmul.f32 %v66, %v66
    %v83 = vmul.f32 %v67, %v67
    %v84 = vmul.f32 %v68, %v68
    %vm85 = vcmask 261120
    %v86 = vsel %vm85, %v69, 0.0
    %87 = vadd.xlane.f32.xlu0 %v86
    %v88 = vpop.xlane.xlu0 %87
    %v89 = vsel %vm85, %v70, 0.0
    %90 = vadd.xlane.f32.xlu0 %v89
    %v91 = vpop.xlane.xlu0 %90
    %v92 = vsel %vm85, %v71, 0.0
    %93 = vadd.xlane.f32.xlu0 %v92
    %v94 = vpop.xlane.xlu0 %93
    %v95 = vsel %vm85, %v72, 0.0
    %96 = vadd.xlane.f32.xlu0 %v95
    %v97 = vpop.xlane.xlu0 %96
    %v98 = vsel %vm85, %v73, 0.0
    %99 = vadd.xlane.f32.xlu0 %v98
    %v100 = vpop.xlane.xlu0 %99
    %v101 = vsel %vm85, %v74, 0.0
    %102 = vadd.xlane.f32.xlu0 %v101
    %v103 = vpop.xlane.xlu0 %102
    %v104 = vsel %vm85, %v75, 0.0
    %105 = vadd.xlane.f32.xlu0 %v104
    %v106 = vpop.xlane.xlu0 %105
    %v107 = vsel %vm85, %v76, 0.0
    %108 = vadd.xlane.f32.xlu0 %v107
    %v109 = vpop.xlane.xlu0 %108
    %v110 = vsel %vm85, %v77, 0.0
    %111 = vadd.xlane.f32.xlu0 %v110
    %v112 = vpop.xlane.xlu0 %111
    %v113 = vsel %vm85, %v78, 0.0
    %114 = vadd.xlane.f32.xlu0 %v113
    %v115 = vpop.xlane.xlu0 %114
    %v116 = vsel %vm85, %v79, 0.0
    %117 = vadd.xlane.f32.xlu0 %v116
    %v118 = vpop.xlane.xlu0 %117
    %v119 = vsel %vm85, %v80, 0.0
    %120 = vadd.xlane.f32.xlu0 %v119
    %v121 = vpop.xlane.xlu0 %120
    %v122 = vsel %vm85, %v81, 0.0
    %123 = vadd.xlane.f32.xlu0 %v122
    %v124 = vpop.xlane.xlu0 %123
    %v125 = vsel %vm85, %v82, 0.0
    %126 = vadd.xlane.f32.xlu0 %v125
    %v127 = vpop.xlane.xlu0 %126
    %v128 = vsel %vm85, %v83, 0.0
    %129 = vadd.xlane.f32.xlu0 %v128
    %v130 = vpop.xlane.xlu0 %129
    %v131 = vsel %vm85, %v84, 0.0
    %132 = vadd.xlane.f32.xlu0 %v131
    %v133 = vpop.xlane.xlu0 %132
    %v134 = vstv %s32
    %v135 = vmul.f32 %v88, %v134
    %v136 = vmul.f32 %v91, %v134
    %v137 = vmul.f32 %v94, %v134
    %v138 = vmul.f32 %v97, %v134
    %v139 = vmul.f32 %v100, %v134
    %v140 = vmul.f32 %v103, %v134
    %v141 = vmul.f32 %v106, %v134
    %v142 = vmul.f32 %v109, %v134
    %v143 = vmul.f32 %v112, %v134
    %v144 = vmul.f32 %v115, %v134
    %v145 = vmul.f32 %v118, %v134
    %v146 = vmul.f32 %v121, %v134
    %v147 = vmul.f32 %v124, %v134
    %v148 = vmul.f32 %v127, %v134
    %v149 = vmul.f32 %v130, %v134
    %v150 = vmul.f32 %v133, %v134
    %v151 = vadd.f32 %v135, 1.0
    %v152 = vlog2.pop %v151
    %v153 = vmul.f32 %v152, 0.6931472
    %v154 = vmul.f32 -0.5, %v135
    %v155 = vadd.f32 %v154, 1.0
    %v156 = vmul.f32 %v155, %v135
    %v157 = vand.u32 2147483647, %v135
    %vm158 = vcmp.lt.f32.partialorder %v157, 0.0004427343
    %v159 = vsel %vm158, %v156, %v153
    %v160 = vadd.f32 %v136, 1.0
    %v161 = vlog2.pop %v160
    %v162 = vmul.f32 %v161, 0.6931472
    %v163 = vmul.f32 -0.5, %v136
    %v164 = vadd.f32 %v163, 1.0
    %v165 = vmul.f32 %v164, %v136
    %v166 = vand.u32 2147483647, %v136
    %vm167 = vcmp.lt.f32.partialorder %v166, 0.0004427343
    %v168 = vsel %vm167, %v165, %v162
    %v169 = vadd.f32 %v137, 1.0
    %v170 = vlog2.pop %v169
    %v171 = vmul.f32 %v170, 0.6931472
    %v172 = vmul.f32 -0.5, %v137
    %v173 = vadd.f32 %v172, 1.0
    %v174 = vmul.f32 %v173, %v137
    %v175 = vand.u32 2147483647, %v137
    %vm176 = vcmp.lt.f32.partialorder %v175, 0.0004427343
    %v177 = vsel %vm176, %v174, %v171
    %v178 = vadd.f32 %v138, 1.0
    %v179 = vlog2.pop %v178
    %v180 = vmul.f32 %v179, 0.6931472
    %v181 = vmul.f32 -0.5, %v138
    %v182 = vadd.f32 %v181, 1.0
    %v183 = vmul.f32 %v182, %v138
    %v184 = vand.u32 2147483647, %v138
    %vm185 = vcmp.lt.f32.partialorder %v184, 0.0004427343
    %v186 = vsel %vm185, %v183, %v180
    %v187 = vadd.f32 %v139, 1.0
    %v188 = vlog2.pop %v187
    %v189 = vmul.f32 %v188, 0.6931472
    %v190 = vmul.f32 -0.5, %v139
    %v191 = vadd.f32 %v190, 1.0
    %v192 = vmul.f32 %v191, %v139
    %v193 = vand.u32 2147483647, %v139
    %vm194 = vcmp.lt.f32.partialorder %v193, 0.0004427343
    %v195 = vsel %vm194, %v192, %v189
    %v196 = vadd.f32 %v140, 1.0
    %v197 = vlog2.pop %v196
    %v198 = vmul.f32 %v197, 0.6931472
    %v199 = vmul.f32 -0.5, %v140
    %v200 = vadd.f32 %v199, 1.0
    %v201 = vmul.f32 %v200, %v140
    %v202 = vand.u32 2147483647, %v140
    %vm203 = vcmp.lt.f32.partialorder %v202, 0.0004427343
    %v204 = vsel %vm203, %v201, %v198
    %v205 = vadd.f32 %v141, 1.0
    %v206 = vlog2.pop %v205
    %v207 = vmul.f32 %v206, 0.6931472
    %v208 = vmul.f32 -0.5, %v141
    %v209 = vadd.f32 %v208, 1.0
    %v210 = vmul.f32 %v209, %v141
    %v211 = vand.u32 2147483647, %v141
    %vm212 = vcmp.lt.f32.partialorder %v211, 0.0004427343
    %v213 = vsel %vm212, %v210, %v207
    %v214 = vadd.f32 %v142, 1.0
    %v215 = vlog2.pop %v214
    %v216 = vmul.f32 %v215, 0.6931472
    %v217 = vmul.f32 -0.5, %v142
    %v218 = vadd.f32 %v217, 1.0
    %v219 = vmul.f32 %v218, %v142
    %v220 = vand.u32 2147483647, %v142
    %vm221 = vcmp.lt.f32.partialorder %v220, 0.0004427343
    %v222 = vsel %vm221, %v219, %v216
    %v223 = vadd.f32 %v143, 1.0
    %v224 = vlog2.pop %v223
    %v225 = vmul.f32 %v224, 0.6931472
    %v226 = vmul.f32 -0.5, %v143
    %v227 = vadd.f32 %v226, 1.0
    %v228 = vmul.f32 %v227, %v143
    %v229 = vand.u32 2147483647, %v143
    %vm230 = vcmp.lt.f32.partialorder %v229, 0.0004427343
    %v231 = vsel %vm230, %v228, %v225
    %v232 = vadd.f32 %v144, 1.0
    %v233 = vlog2.pop %v232
    %v234 = vmul.f32 %v233, 0.6931472
    %v235 = vmul.f32 -0.5, %v144
    %v236 = vadd.f32 %v235, 1.0
    %v237 = vmul.f32 %v236, %v144
    %v238 = vand.u32 2147483647, %v144
    %vm239 = vcmp.lt.f32.partialorder %v238, 0.0004427343
    %v240 = vsel %vm239, %v237, %v234
    %v241 = vadd.f32 %v145, 1.0
    %v242 = vlog2.pop %v241
    %v243 = vmul.f32 %v242, 0.6931472
    %v244 = vmul.f32 -0.5, %v145
    %v245 = vadd.f32 %v244, 1.0
    %v246 = vmul.f32 %v245, %v145
    %v247 = vand.u32 2147483647, %v145
    %vm248 = vcmp.lt.f32.partialorder %v247, 0.0004427343
    %v249 = vsel %vm248, %v246, %v243
    %v250 = vadd.f32 %v146, 1.0
    %v251 = vlog2.pop %v250
    %v252 = vmul.f32 %v251, 0.6931472
    %v253 = vmul.f32 -0.5, %v146
    %v254 = vadd.f32 %v253, 1.0
    %v255 = vmul.f32 %v254, %v146
    %v256 = vand.u32 2147483647, %v146
    %vm257 = vcmp.lt.f32.partialorder %v256, 0.0004427343
    %v258 = vsel %vm257, %v255, %v252
    %v259 = vadd.f32 %v147, 1.0
    %v260 = vlog2.pop %v259
    %v261 = vmul.f32 %v260, 0.6931472
    %v262 = vmul.f32 -0.5, %v147
    %v263 = vadd.f32 %v262, 1.0
    %v264 = vmul.f32 %v263, %v147
    %v265 = vand.u32 2147483647, %v147
    %vm266 = vcmp.lt.f32.partialorder %v265, 0.0004427343
    %v267 = vsel %vm266, %v264, %v261
    %v268 = vadd.f32 %v148, 1.0
    %v269 = vlog2.pop %v268
    %v270 = vmul.f32 %v269, 0.6931472
    %v271 = vmul.f32 -0.5, %v148
    %v272 = vadd.f32 %v271, 1.0
    %v273 = vmul.f32 %v272, %v148
    %v274 = vand.u32 2147483647, %v148
    %vm275 = vcmp.lt.f32.partialorder %v274, 0.0004427343
    %v276 = vsel %vm275, %v273, %v270
    %v277 = vadd.f32 %v149, 1.0
    %v278 = vlog2.pop %v277
    %v279 = vmul.f32 %v278, 0.6931472
    %v280 = vmul.f32 -0.5, %v149
    %v281 = vadd.f32 %v280, 1.0
    %v282 = vmul.f32 %v281, %v149
    %v283 = vand.u32 2147483647, %v149
    %vm284 = vcmp.lt.f32.partialorder %v283, 0.0004427343
    %v285 = vsel %vm284, %v282, %v279
    %v286 = vadd.f32 %v150, 1.0
    %v287 = vlog2.pop %v286
    %v288 = vmul.f32 %v287, 0.6931472
    %v289 = vmul.f32 -0.5, %v150
    %v290 = vadd.f32 %v289, 1.0
    %v291 = vmul.f32 %v290, %v150
    %v292 = vand.u32 2147483647, %v150
    %vm293 = vcmp.lt.f32.partialorder %v292, 0.0004427343
    %v294 = vsel %vm293, %v291, %v288
    %v295 = vsub.f32 0.0, %v159
    %v296 = vsub.f32 0.0, %v168
    %v297 = vsub.f32 0.0, %v177
    %v298 = vsub.f32 0.0, %v186
    %v299 = vsub.f32 0.0, %v195
    %v300 = vsub.f32 0.0, %v204
    %v301 = vsub.f32 0.0, %v213
    %v302 = vsub.f32 0.0, %v222
    %v303 = vsub.f32 0.0, %v231
    %v304 = vsub.f32 0.0, %v240
    %v305 = vsub.f32 0.0, %v249
    %v306 = vsub.f32 0.0, %v258
    %v307 = vsub.f32 0.0, %v267
    %v308 = vsub.f32 0.0, %v276
    %v309 = vsub.f32 0.0, %v285
    %v310 = vsub.f32 0.0, %v294
    %v327 = vlaneseq
    %v328 = vand.u32 %v327, 127
    %v329 = vperm.slane %v295, %v328
    %v330 = vadd.s32 %v328, 4294967288
    %v331 = vperm.slane %v296, %v330
    %vm332 = vcmask 130112
    %v333 = vsel %vm332, %v331, %v329
    %v334 = vadd.s32 %v328, 4294967280
    %v335 = vperm.slane %v297, %v334
    %vm336 = vcmask 195712
    %v337 = vsel %vm336, %v335, %v333
    %v338 = vadd.s32 %v328, 4294967272
    %v339 = vperm.slane %v298, %v338
    %vm340 = vcmask 261312
    %v341 = vsel %vm340, %v339, %v337
    %v342 = vadd.s32 %v328, 4294967264
    %v343 = vperm.slane %v299, %v342
    %vm344 = vcmask 326912
    %v345 = vsel %vm344, %v343, %v341
    %v346 = vadd.s32 %v328, 4294967256
    %v347 = vperm.slane %v300, %v346
    %vm348 = vcmask 392512
    %v349 = vsel %vm348, %v347, %v345
    %v350 = vadd.s32 %v328, 4294967248
    %v351 = vperm.slane %v301, %v350
    %vm352 = vcmask 458112
    %v353 = vsel %vm352, %v351, %v349
    %v354 = vadd.s32 %v328, 4294967240
    %v355 = vperm.slane %v302, %v354
    %vm356 = vcmask 523712
    %v357 = vsel %vm356, %v355, %v353
    %v358 = vadd.s32 %v328, 4294967232
    %v359 = vperm.slane %v303, %v358
    %vm360 = vcmask 589312
    %v361 = vsel %vm360, %v359, %v357
    %v362 = vadd.s32 %v328, 4294967224
    %v363 = vperm.slane %v304, %v362
    %vm364 = vcmask 654912
    %v365 = vsel %vm364, %v363, %v361
    %v366 = vadd.s32 %v328, 4294967216
    %v367 = vperm.slane %v305, %v366
    %vm368 = vcmask 720512
    %v369 = vsel %vm368, %v367, %v365
    %v370 = vadd.s32 %v328, 4294967208
    %v371 = vperm.slane %v306, %v370
    %vm372 = vcmask 786112
    %v373 = vsel %vm372, %v371, %v369
    %v374 = vadd.s32 %v328, 4294967200
    %v375 = vperm.slane %v307, %v374
    %vm376 = vcmask 851712
    %v377 = vsel %vm376, %v375, %v373
    %v378 = vadd.s32 %v328, 4294967192
    %v379 = vperm.slane %v308, %v378
    %vm380 = vcmask 917312
    %v381 = vsel %vm380, %v379, %v377
    %v382 = vadd.s32 %v328, 4294967184
    %v383 = vperm.slane %v309, %v382
    %vm384 = vcmask 982912
    %v385 = vsel %vm384, %v383, %v381
    %v386 = vadd.s32 %v328, 4294967176
    %v387 = vperm.slane %v310, %v386
    %vm388 = vcmask 1048512
    %v389 = vsel %vm388, %v387, %v385
    %391 = vst [vmem:[#allocation6] sm:$0x1] %v389
    // Predicated region
    $region18: #{tpu_custom_call.1} parent=1 // pred_check
      _
    $region19: #{tpu_custom_call.1} parent=1 // pred_check_branch
      %393 = sbr.rel (0) target = $region21
    $region20: #{tpu_custom_call.1} parent=1 // pred_region
      %395 = vsyncadd [#allocation5], 0
      %s397 = sshll.u32 [#allocation6], 4
      %s398 = int_to_ptr.vmem [resolvable:$true] %s397
      %s399 = sshll.u32 %s3, 4
      %s400 = int_to_ptr.hbm [resolvable:$true] %s399
      %402 = dma.vmem_to_hbm [thread:$0]  %s398, 16, %s400, [#allocation5]
    $region21: #{tpu_custom_call.1} parent=1 // pred_fallthru
      _
    // Predicated region
    $region22: #{tpu_custom_call.1} parent=1 // pred_check
      _
    $region23: #{tpu_custom_call.1} parent=1 // pred_check_branch
      %404 = sbr.rel (0) target = $region25
    $region24: #{tpu_custom_call.1} parent=1 // pred_region
      %406 = dma.done [#allocation5], 16
    $region25: #{tpu_custom_call.1} parent=1 // pred_fallthru
      _
    %407 = vsyncpa [#allocation4], 1
    %408 = vsyncpa [#allocation5], 1

</llo_original>
